<compile_context>
chip_gen: v6e
topology: v6e:2x2x1
jax: 0.10.0
libtpu: 0.0.40
codegen_flags: <defaults>
</compile_context>

<pallas_src>
import jax
import jax.numpy as jnp
from jax.experimental import pallas as pl
from jax.experimental.pallas import tpu as pltpu


def _round_up(x, m):
    return (x + m - 1) // m * m


# ----------------------------------------------------------------------------
# Pallas kernel: symmetry-folded 5x5 KV conv via lane rolls + 3 row planes.
# ----------------------------------------------------------------------------
def _kv_conv_kernel(x_ref, o_ref, xp_ref):
    # x_ref : (1, h, w)   raw input block (native dtype)
    # o_ref : (1, h, w)   output block (same dtype as input)
    # xp_ref: (sh, ow)    f32 zero-padded scratch, sh = round_up(h,8)+8,
    #                     ow = round_up(w,128) (+128 if fewer than 2 spare cols)
    _, h, w = x_ref.shape
    ow = xp_ref.shape[1]

    # Build the zero-padded canvas in VMEM (kills the HBM pad pass).
    # Image rows live at scratch rows [2, 2+h); columns [0, w).  Everything
    # else (top/bottom halo rows, right lane padding) is zero.
    xp_ref[...] = jnp.zeros_like(xp_ref)
    xp_ref[2:2 + h, 0:w] = x_ref[0].astype(jnp.float32)

    xp = xp_ref[...]

    # Horizontal (lane-axis) symmetric sums via XLU rolls.  Positive shift k
    # gives result[j] = xp[(j - k) mod ow]; the >=2 zero columns at the right
    # edge make the circular wrap equal to conv zero padding, and the
    # symmetric sums are invariant to the roll sign convention.
    s0 = xp
    s1 = pltpu.roll(xp, 1, axis=1) + pltpu.roll(xp, ow - 1, axis=1)   # x[j-1]+x[j+1]
    s2 = pltpu.roll(xp, 2, axis=1) + pltpu.roll(xp, ow - 2, axis=1)   # x[j-2]+x[j+2]

    # Row-filter planes (KV filter rows 0/4, 1/3 and 2), constants pre-folded:
    #   A row: [-1,  2,  -2,  2, -1] / 12
    #   B row: [ 2, -6,   8, -6,  2] / 12
    #   C row: [-2,  8, -12,  8, -2] / 12  ==  -2 * (A + B)
    a = (2.0 / 12.0) * s1 - (1.0 / 12.0) * s2 - (2.0 / 12.0) * s0
    b = (2.0 / 12.0) * s2 - (6.0 / 12.0) * s1 + (8.0 / 12.0) * s0
    c = -2.0 * (a + b)

    # Vertical combine: output row y sits at scratch row y+2 and needs scratch
    # rows y..y+4 (A at y, y+4; B at y+1, y+3; C at y+2).
    out = (a[0:h] + a[4:4 + h]) + (b[1:1 + h] + b[3:3 + h]) + c[2:2 + h]

    o_ref[0] = out[:, 0:w].astype(o_ref.dtype)


# ----------------------------------------------------------------------------
# Wrapper: layout math + pallas_call.
# ----------------------------------------------------------------------------
def kv_filter_conv(image_nchw):
    """Equivalent of F.conv2d(image, kv_filter, stride=1, padding=2)."""
    n, c, h, w = image_nchw.shape
    assert c == 1, "ImageProcessing expects a single input channel"
    x = image_nchw.reshape(n, h, w)

    # Scratch geometry: rows = 2 halo + h image + zeros up to a multiple of 8
    # (with >= 2 zero rows below the image); cols = lane-aligned width with at
    # least 2 zero columns to the right so roll wrap-around reads zeros.
    sh = _round_up(h, 8) + 8
    ow = _round_up(w, 128)
    if ow - w < 2:
        ow += 128

    itemsize = jnp.dtype(x.dtype).itemsize
    in_block = h * w * itemsize
    out_block = h * w * itemsize
    plane = sh * ow * 4
    # Double-buffered in/out blocks + scratch + headroom for Mosaic-managed
    # intermediate planes; cap at 48 MiB (leave headroom on v7x's 64 MiB VMEM).
    vmem_limit = int(min(48 * 1024 * 1024,
                         max(8 * 1024 * 1024,
                             2 * (in_block + out_block) + 10 * plane)))

    cost = pl.CostEstimate(
        flops=50 * n * h * w,                 # 25 MAC / output element
        transcendentals=0,
        bytes_accessed=n * (in_block + out_block))

    out = pl.pallas_call(
        _kv_conv_kernel,
        out_shape=jax.ShapeDtypeStruct((n, h, w), x.dtype),
        grid_spec=pltpu.PrefetchScalarGridSpec(
            num_scalar_prefetch=0,
            grid=(n,),
            in_specs=[pl.BlockSpec((1, h, w), lambda b: (b, 0, 0))],
            out_specs=pl.BlockSpec((1, h, w), lambda b: (b, 0, 0)),
            scratch_shapes=[pltpu.VMEM((sh, ow), jnp.float32)],
        ),
        compiler_params=pltpu.CompilerParams(
            dimension_semantics=("parallel",),
            vmem_limit_bytes=vmem_limit),
        cost_estimate=cost,
    )(x)

    return out.reshape(n, 1, h, w)


# ----------------------------------------------------------------------------
# Demo / self-check against the XLA conv reference.
# ----------------------------------------------------------------------------
if __name__ == "__main__":
    kv = jnp.array([[-1., 2., -2., 2., -1.],
                    [2., -6., 8., -6., 2.],
                    [-2., 8., -12., 8., -2.],
                    [2., -6., 8., -6., 2.],
                    [-1., 2., -2., 2., -1.]], jnp.float32) / 12.0

    def reference(img):
        return jax.lax.conv_general_dilated(
            img.astype(jnp.float32), kv.reshape(1, 1, 5, 5),
            window_strides=(1, 1), padding=((2, 2), (2, 2)),
            dimension_numbers=("NCHW", "OIHW", "NCHW"))

    run = jax.jit(kv_filter_conv)
    key = jax.random.PRNGKey(0)

    # Small shapes: the XuNet-style case, an odd/unaligned case, and an
    # exactly-128-wide case (exercises the extra lane-pad column path).
    shapes = [(2, 1, 16, 16), (1, 1, 37, 75), (2, 1, 24, 128)]
    for i, shp in enumerate(shapes):
        img = jax.random.normal(jax.random.fold_in(key, i), shp,
                                dtype=jnp.float32)
        out = jax.block_until_ready(run(img))
        ref = reference(img)
        assert out.shape == shp
        assert bool(jnp.all(jnp.isfinite(out)))
        assert bool(jnp.allclose(out, ref, atol=1e-4, rtol=1e-4))

    print("KERNEL_OK")
</pallas_src>

<mosaic_0001>
module attributes {stable_mosaic.version = 11 : i64} {
  func.func @_kv_conv_kernel(%arg0: i32, %arg1: memref<1x16x16xf32, #tpu.memory_space<vmem>>, %arg2: memref<1x16x16xf32, #tpu.memory_space<vmem>>, %arg3: memref<24x128xf32, #tpu.memory_space<vmem>>) attributes {dimension_semantics = [#tpu.dimension_semantics<parallel>], iteration_bounds = array<i64: 2>, scalar_prefetch = 0 : i64, scratch_operands = 1 : i64, tpu.core_type = #tpu.core_type<tc>, window_params = [{transform_indices = @transform_0, window_bounds = array<i64: 1, 16, 16>}, {transform_indices = @transform_1, window_bounds = array<i64: 1, 16, 16>}]} {
    %cst = arith.constant 0.000000e+00 : f32
    %0 = vector.broadcast %cst : f32 to vector<24x128xf32>
    %c0 = arith.constant 0 : index
    %c0_0 = arith.constant 0 : index
    %1 = vector.load %arg3[%c0, %c0_0] : memref<24x128xf32, #tpu.memory_space<vmem>>, vector<24x128xf32>
    tpu.vector_store %arg3[%c0, %c0_0], %0 {strides = array<i32>} : memref<24x128xf32, #tpu.memory_space<vmem>>, vector<24x128xf32>,
    %c0_1 = arith.constant 0 : index
    %c0_2 = arith.constant 0 : index
    %c0_3 = arith.constant 0 : index
    %2 = vector.load %arg1[%c0_1, %c0_2, %c0_3] : memref<1x16x16xf32, #tpu.memory_space<vmem>>, vector<1x16x16xf32>
    %3 = vector.shape_cast %2 : vector<1x16x16xf32> to vector<16x16xf32>
    %c2 = arith.constant 2 : index
    %c0_4 = arith.constant 0 : index
    %4 = vector.load %arg3[%c2, %c0_4] : memref<24x128xf32, #tpu.memory_space<vmem>>, vector<16x16xf32>
    tpu.vector_store %arg3[%c2, %c0_4], %3 {strides = array<i32>} : memref<24x128xf32, #tpu.memory_space<vmem>>, vector<16x16xf32>,
    %c0_5 = arith.constant 0 : index
    %c0_6 = arith.constant 0 : index
    %5 = vector.load %arg3[%c0_5, %c0_6] : memref<24x128xf32, #tpu.memory_space<vmem>>, vector<24x128xf32>
    %c1_i32 = arith.constant 1 : i32
    %6 = tpu.dynamic_rotate %5 by %c1_i32 dim 1 : vector<24x128xf32>, i32 -> vector<24x128xf32>
    %c127_i32 = arith.constant 127 : i32
    %7 = tpu.dynamic_rotate %5 by %c127_i32 dim 1 : vector<24x128xf32>, i32 -> vector<24x128xf32>
    %8 = arith.addf %6, %7 : vector<24x128xf32>
    %c2_i32 = arith.constant 2 : i32
    %9 = tpu.dynamic_rotate %5 by %c2_i32 dim 1 : vector<24x128xf32>, i32 -> vector<24x128xf32>
    %c126_i32 = arith.constant 126 : i32
    %10 = tpu.dynamic_rotate %5 by %c126_i32 dim 1 : vector<24x128xf32>, i32 -> vector<24x128xf32>
    %11 = arith.addf %9, %10 : vector<24x128xf32>
    %cst_7 = arith.constant 0.166666672 : f32
    %12 = vector.broadcast %cst_7 : f32 to vector<24x128xf32>
    %13 = arith.mulf %12, %8 : vector<24x128xf32>
    %cst_8 = arith.constant 0.0833333358 : f32
    %14 = vector.broadcast %cst_8 : f32 to vector<24x128xf32>
    %15 = arith.mulf %14, %11 : vector<24x128xf32>
    %16 = arith.subf %13, %15 : vector<24x128xf32>
    %cst_9 = arith.constant 0.166666672 : f32
    %17 = vector.broadcast %cst_9 : f32 to vector<24x128xf32>
    %18 = arith.mulf %17, %5 : vector<24x128xf32>
    %19 = arith.subf %16, %18 : vector<24x128xf32>
    %cst_10 = arith.constant 0.166666672 : f32
    %20 = vector.broadcast %cst_10 : f32 to vector<24x128xf32>
    %21 = arith.mulf %20, %11 : vector<24x128xf32>
    %cst_11 = arith.constant 5.000000e-01 : f32
    %22 = vector.broadcast %cst_11 : f32 to vector<24x128xf32>
    %23 = arith.mulf %22, %8 : vector<24x128xf32>
    %24 = arith.subf %21, %23 : vector<24x128xf32>
    %cst_12 = arith.constant 0.666666686 : f32
    %25 = vector.broadcast %cst_12 : f32 to vector<24x128xf32>
    %26 = arith.mulf %25, %5 : vector<24x128xf32>
    %27 = arith.addf %24, %26 : vector<24x128xf32>
    %28 = arith.addf %19, %27 : vector<24x128xf32>
    %cst_13 = arith.constant -2.000000e+00 : f32
    %29 = vector.broadcast %cst_13 : f32 to vector<24x128xf32>
    %30 = arith.mulf %29, %28 : vector<24x128xf32>
    %31 = vector.extract_strided_slice %19 {offsets = [0, 0], sizes = [16, 128], strides = [1, 1]} : vector<24x128xf32> to vector<16x128xf32>
    %32 = vector.extract_strided_slice %19 {offsets = [4, 0], sizes = [16, 128], strides = [1, 1]} : vector<24x128xf32> to vector<16x128xf32>
    %33 = arith.addf %31, %32 : vector<16x128xf32>
    %34 = vector.extract_strided_slice %27 {offsets = [1, 0], sizes = [16, 128], strides = [1, 1]} : vector<24x128xf32> to vector<16x128xf32>
    %35 = vector.extract_strided_slice %27 {offsets = [3, 0], sizes = [16, 128], strides = [1, 1]} : vector<24x128xf32> to vector<16x128xf32>
    %36 = arith.addf %34, %35 : vector<16x128xf32>
    %37 = arith.addf %33, %36 : vector<16x128xf32>
    %38 = vector.extract_strided_slice %30 {offsets = [2, 0], sizes = [16, 128], strides = [1, 1]} : vector<24x128xf32> to vector<16x128xf32>
    %39 = arith.addf %37, %38 : vector<16x128xf32>
    %40 = vector.extract_strided_slice %39 {offsets = [0, 0], sizes = [16, 16], strides = [1, 1]} : vector<16x128xf32> to vector<16x16xf32>
    %c0_14 = arith.constant 0 : index
    %c0_15 = arith.constant 0 : index
    %c0_16 = arith.constant 0 : index
    %41 = vector.load %arg2[%c0_14, %c0_15, %c0_16] : memref<1x16x16xf32, #tpu.memory_space<vmem>>, vector<1x16x16xf32>
    %42 = vector.shape_cast %41 : vector<1x16x16xf32> to vector<16x16xf32>
    %43 = vector.shape_cast %40 : vector<16x16xf32> to vector<1x16x16xf32>
    tpu.vector_store %arg2[%c0_14, %c0_15, %c0_16], %43 {strides = array<i32>} : memref<1x16x16xf32, #tpu.memory_space<vmem>>, vector<1x16x16xf32>,
    return
  }
  func.func @transform_0(%arg0: i32) -> (i32, i32, i32) {
    %c0_i32 = arith.constant 0 : i32
    %c0_i32_0 = arith.constant 0 : i32
    %c0_i32_1 = arith.constant 0 : i32
    return %arg0, %c0_i32, %c0_i32_0 : i32, i32, i32
  }
  func.func @transform_1(%arg0: i32) -> (i32, i32, i32) {
    %c0_i32 = arith.constant 0 : i32
    %c0_i32_0 = arith.constant 0 : i32
    %c0_i32_1 = arith.constant 0 : i32
    return %arg0, %c0_i32, %c0_i32_0 : i32, i32, i32
  }
}

</mosaic_0001>

<llo_original>
// kernel: kv_filter_conv.1
$region0: #{kv_filter_conv.1}
  #allocation0 [shape = 'u32[]', space=smem, size = 0x4, offset = 0x4, fixed_abs, tag = 'smem constant byte address 0x4 - core index']
  #allocation1 [shape = 'u32[144,128]{1,0:T(1,128)}', space=vmem, size = 0x12000, scoped, tag = 'internal scratch']
  #allocation2 [shape = 'f32[24,128]{1,0:T(8,128)}', space=vmem, size = 0x3000, scoped, tag = 'scratch operand']
  %s0 = inlined_call_operand.hbm [shape: f32[2,16,16], index: 0, kind: input, shape index: {}]
  %s1 = inlined_call_operand.hbm [shape: f32[2,16,16], index: 1, kind: output, shape index: {}]
  %s2 = sld [smem:[#allocation0]]
  $region41: #{kv_filter_conv.1} parent=0
    _
  %s4 = ssub.s32 1, %s2
  %s5 = scalar_select 0, %s4, %s2
  $region1: #{kv_filter_conv.1} parent=0
    #allocation3 [shape = 'u8[16384]{0}', space=vmem, size = 0x4000, scoped, tag = 'input window, operand 0']
    #allocation4 [shape = 's32[2]{0}', space=sflag, size = 0x8, scoped, tag = 'scoped memory for kv_filter_conv.1']
    #allocation5 [shape = 's32[2]{0}', space=sflag, size = 0x8, scoped, tag = 'scoped memory for kv_filter_conv.1']
    #allocation6 [shape = 'u8[16384]{0}', space=vmem, size = 0x4000, scoped, tag = 'output window, operand 0']
    %6 = vsyncpa [#allocation4], 0
    %s7 = scalar_lea.sflag [#allocation4], 1
    %8 = vsyncpa %s7, 0
    %9 = vsyncpa [#allocation5], 0
    %s10 = scalar_lea.sflag [#allocation5], 1
    %11 = vsyncpa %s10, 0
    loop: start=0, step=1, limit=4
    $region2: #{kv_filter_conv.1} parent=1 // loop_pre_header
      _
    $region3: #{kv_filter_conv.1} parent=1 // loop_header
      %s13 = sphi 0, %s17
      %p14 = scmp.ge.s32.totalorder %s13, 4
      %s23 = sphi 0, %s25
      %s26 = sphi 0, %s23
      %s27 = sphi 0, %s26
      %s43 = sphi 0, %s27
      %s49 = sphi 0, %s51
      %s52 = sphi 0, %s49
      %s53 = sphi 0, %s52
      %s69 = sphi 0, %s53
    $region4: #{kv_filter_conv.1} parent=1 // loop_header_branch
      %16 = sbr.rel (%p14) target = $region8
    $region5: #{kv_filter_conv.1} parent=1 // loop_body
      %s18 = ssub.s32 %s13, 1
      %s19 = ssub.s32 %s13, 2
      %s20 = sadd.s32 %s13, 1
      %s21 = ssub.s32 %s13, %s20
      %p22 = scmp.eq.s32.totalorder %s21, 0
      %s24 = sadd.s32 %s23, 1
      %s25 = scalar_select %p22, %s23, %s24
      %p28 = pneg %p22
      %p29 = scmp.eq.s32.totalorder %s13, 1
      %p30 = por %p28, %p29
      %p31 = scmp.ne.s32.totalorder %s23, %s26
      %p32 = scmp.eq.s32.totalorder %s13, 0
      %p33 = por %p31, %p32
      %p34 = scmp.ne.s32.totalorder %s23, %s26
      %p35 = scmp.eq.s32.totalorder %s18, 1
      %p36 = por %p34, %p35
      %p37 = scmp.ne.s32.totalorder %s26, %s27
      %p38 = scmp.eq.s32.totalorder %s18, 0
      %p39 = por %p37, %p38
      %p40 = scmp.ne.s32.totalorder %s26, %s27
      %p41 = scmp.eq.s32.totalorder %s19, 1
      %p42 = por %p40, %p41
      %p44 = scmp.ne.s32.totalorder %s27, %s43
      %p45 = scmp.eq.s32.totalorder %s19, 0
      %p46 = por %p44, %p45
      %s47 = ssub.s32 %s13, %s20
      %p48 = scmp.eq.s32.totalorder %s47, 0
      %s50 = sadd.s32 %s49, 1
      %s51 = scalar_select %p48, %s49, %s50
      %p54 = pneg %p48
      %p55 = scmp.eq.s32.totalorder %s13, 1
      %p56 = por %p54, %p55
      %p57 = scmp.ne.s32.totalorder %s49, %s52
      %p58 = scmp.eq.s32.totalorder %s13, 0
      %p59 = por %p57, %p58
      %p60 = scmp.ne.s32.totalorder %s49, %s52
      %p61 = scmp.eq.s32.totalorder %s18, 1
      %p62 = por %p60, %p61
      %p63 = scmp.ne.s32.totalorder %s52, %s53
      %p64 = scmp.eq.s32.totalorder %s18, 0
      %p65 = por %p63, %p64
      %p66 = scmp.ne.s32.totalorder %s52, %s53
      %p67 = scmp.eq.s32.totalorder %s19, 1
      %p68 = por %p66, %p67
      %p70 = scmp.ne.s32.totalorder %s53, %s69
      %p71 = scmp.eq.s32.totalorder %s19, 0
      %p72 = por %p70, %p71
      %p73 = scmp.le.s32.totalorder 1, %s13
      %p74 = scmp.lt.s32.totalorder %s13, 3
      %p75 = pnand %p73, %p74
      %p76 = pneg %p75
      // Predicated region
      $region9: #{kv_filter_conv.1} parent=5 // pred_check
        _
      $region10: #{kv_filter_conv.1} parent=5 // pred_check_branch
        %78 = sbr.rel (%p75) target = $region12
      $region11: #{kv_filter_conv.1} parent=5 // pred_region
        %s79 = ssub.s32 %s13, 1
      $region12: #{kv_filter_conv.1} parent=5 // pred_fallthru
        _
      %p80 = scmp.lt.s32.totalorder %s13, 2
      // Predicated region
      $region13: #{kv_filter_conv.1} parent=5 // pred_check
        %p81 = pneg %p80
      $region14: #{kv_filter_conv.1} parent=5 // pred_check_branch
        %83 = sbr.rel (%p81) target = $region16
      $region15: #{kv_filter_conv.1} parent=5 // pred_region
        // Predicated region
        $region17: #{kv_filter_conv.1} parent=15 // pred_check
          %p84 = pneg %p33
        $region18: #{kv_filter_conv.1} parent=15 // pred_check_branch
          %86 = sbr.rel (%p84) target = $region20
        $region19: #{kv_filter_conv.1} parent=15 // pred_region
          %s87 = sand.u32 %s23, 1
          %s88 = scalar_lea.sflag [#allocation4], %s87
          %s89 = sand.u32 %s23, 1
          %s90 = smul.addr %s89, 16
          %s91 = scalar_lea.vmem [#allocation3], %s90
          %s93 = ssub.s32 256, 256
          %94 = vsyncadd %s88, %s93
          %s95 = smul.addr %s13, 2
          %s96 = smul.addr %s95, 128
          %s97 = scalar_lea.hbm %s0, %s96
          %s98 = sshll.u32 %s91, 4
          %s99 = int_to_ptr.vmem [resolvable:$true] %s98
          %104 = dma.hbm_to_vmem [thread:$0]  %s97, 256, %s99, %s88, 128, 128, 8
        $region20: #{kv_filter_conv.1} parent=15 // pred_fallthru
          _
      $region16: #{kv_filter_conv.1} parent=5 // pred_fallthru
        _
      %p105 = scmp.le.s32.totalorder 1, %s13
      %p106 = scmp.lt.s32.totalorder %s13, 3
      %p107 = pnand %p105, %p106
      %p108 = pneg %p107
      // Predicated region
      $region21: #{kv_filter_conv.1} parent=5 // pred_check
        _
      $region22: #{kv_filter_conv.1} parent=5 // pred_check_branch
        %110 = sbr.rel (%p107) target = $region24
      $region23: #{kv_filter_conv.1} parent=5 // pred_region
        %s111 = ssub.s32 %s13, 1
        %s112 = sand.u32 %s26, 1
        %s113 = scalar_lea.sflag [#allocation4], %s112
        %s114 = sand.u32 %s26, 1
        %s115 = smul.addr %s114, 16
        %s116 = scalar_lea.vmem [#allocation3], %s115
        // Predicated region
        $region25: #{kv_filter_conv.1} parent=23 // pred_check
          %p117 = pneg %p39
        $region26: #{kv_filter_conv.1} parent=23 // pred_check_branch
          %119 = sbr.rel (%p117) target = $region28
        $region27: #{kv_filter_conv.1} parent=23 // pred_region
          %120 = dma.done %s113, 256
        $region28: #{kv_filter_conv.1} parent=23 // pred_fallthru
          _
        %s121 = sand.u32 %s26, 1
        %s122 = scalar_lea.sflag [#allocation4], %s121
        %s123 = sand.u32 %s26, 1
        %s124 = smul.addr %s123, 16
        %s125 = scalar_lea.vmem [#allocation3], %s124
        %p126 = pneg %p39
        %p127 = pneg %p36
        %p128 = pneg %p65
        %p129 = pneg %p62
        %s130 = sand.u32 %s52, 1
        %s131 = scalar_lea.sflag [#allocation5], %s130
        %s132 = sand.u32 %s52, 1
        %s133 = smul.addr %s132, 16
        %s134 = scalar_lea.vmem [#allocation6], %s133
        %135 = vst [vmem:[#allocation2] sm:$0xff] 0.0
        %136 = vst [vmem:[#allocation2 + $0x8] sm:$0xff] 0.0
        %137 = vst [vmem:[#allocation2 + $0x10] sm:$0xff] 0.0
        %v138 = vld [vmem:[%s116] sm:$0xff]
        %v139 = vld [vmem:[%s116 + $0x8] sm:$0xff]
        %vm140 = vcmask 130048
        %141 = vst.msk [vmem:[#allocation2 + $0x2] sm:$0xff] %vm140, %v138
        %142 = vst.msk [vmem:[#allocation2 + $0xa] sm:$0xff] %vm140, %v139
        %v143 = vld [vmem:[#allocation2] sm:$0xff]
        %v144 = vld [vmem:[#allocation2 + $0x8] sm:$0xff]
        %v145 = vld [vmem:[#allocation2 + $0x10] sm:$0xff]
        %146 = vrot.lane.b32.xlu0 %v143, 1
        %v147 = vpop.permute.xlu0 %146
        %148 = vrot.lane.b32.xlu0 %v144, 1
        %v149 = vpop.permute.xlu0 %148
        %150 = vrot.lane.b32.xlu0 %v145, 1
        %v151 = vpop.permute.xlu0 %150
        %152 = vrot.lane.b32.xlu0 %v143, 127
        %v153 = vpop.permute.xlu0 %152
        %154 = vrot.lane.b32.xlu0 %v144, 127
        %v155 = vpop.permute.xlu0 %154
        %156 = vrot.lane.b32.xlu0 %v145, 127
        %v157 = vpop.permute.xlu0 %156
        %v158 = vadd.f32 %v147, %v153
        %v159 = vadd.f32 %v149, %v155
        %v160 = vadd.f32 %v151, %v157
        %161 = vrot.lane.b32.xlu0 %v143, 2
        %v162 = vpop.permute.xlu0 %161
        %163 = vrot.lane.b32.xlu0 %v144, 2
        %v164 = vpop.permute.xlu0 %163
        %165 = vrot.lane.b32.xlu0 %v145, 2
        %v166 = vpop.permute.xlu0 %165
        %167 = vrot.lane.b32.xlu0 %v143, 126
        %v168 = vpop.permute.xlu0 %167
        %169 = vrot.lane.b32.xlu0 %v144, 126
        %v170 = vpop.permute.xlu0 %169
        %171 = vrot.lane.b32.xlu0 %v145, 126
        %v172 = vpop.permute.xlu0 %171
        %v173 = vadd.f32 %v162, %v168
        %v174 = vadd.f32 %v164, %v170
        %v175 = vadd.f32 %v166, %v172
        %v176 = vmul.f32 %v158, 0.16666667
        %v177 = vmul.f32 %v159, 0.16666667
        %v178 = vmul.f32 %v160, 0.16666667
        %v179 = vmul.f32 %v173, 0.083333336
        %v180 = vmul.f32 %v174, 0.083333336
        %v181 = vmul.f32 %v175, 0.083333336
        %v182 = vsub.f32 %v176, %v179
        %v183 = vsub.f32 %v177, %v180
        %v184 = vsub.f32 %v178, %v181
        %v185 = vmul.f32 %v143, 0.16666667
        %v186 = vmul.f32 %v144, 0.16666667
        %v187 = vmul.f32 %v145, 0.16666667
        %v188 = vsub.f32 %v182, %v185
        %v189 = vsub.f32 %v183, %v186
        %v190 = vsub.f32 %v184, %v187
        %v191 = vmul.f32 %v173, 0.16666667
        %v192 = vmul.f32 %v174, 0.16666667
        %v193 = vmul.f32 %v175, 0.16666667
        %v194 = vmul.f32 %v158, 0.5
        %v195 = vmul.f32 %v159, 0.5
        %v196 = vmul.f32 %v160, 0.5
        %v197 = vsub.f32 %v191, %v194
        %v198 = vsub.f32 %v192, %v195
        %v199 = vsub.f32 %v193, %v196
        %v200 = vmul.f32 %v143, 0.6666667
        %v201 = vmul.f32 %v144, 0.6666667
        %v202 = vmul.f32 %v145, 0.6666667
        %v203 = vadd.f32 %v197, %v200
        %v204 = vadd.f32 %v198, %v201
        %v205 = vadd.f32 %v199, %v202
        %v206 = vadd.f32 %v188, %v203
        %v207 = vadd.f32 %v189, %v204
        %v208 = vadd.f32 %v190, %v205
        %v209 = vmul.f32 %v206, -2.0
        %v210 = vmul.f32 %v207, -2.0
        %v211 = vmul.f32 %v208, -2.0
        %vm215 = vcmask 1043456
        %v216 = vrot.slane %v188, 4
        %v217 = vrot.slane %v189, 4
        %v218 = vsel %vm215, %v216, %v217
        %v219 = vrot.slane %v190, 4
        %v220 = vsel %vm215, %v217, %v219
        %v223 = vadd.f32 %v188, %v218
        %v224 = vadd.f32 %v189, %v220
        %vm228 = vcmask 1045504
        %v229 = vrot.slane %v203, 2
        %v230 = vrot.slane %v204, 2
        %v231 = vsel %vm228, %v229, %v230
        %v232 = vrot.slane %v205, 2
        %v233 = vsel %vm228, %v230, %v232
        %v237 = vadd.f32 %v203, %v231
        %v238 = vadd.f32 %v204, %v233
        %v239 = vadd.f32 %v205, %v232
        %vm243 = vcmask 1046528
        %v244 = vrot.slane %v237, 1
        %v245 = vrot.slane %v238, 1
        %v246 = vsel %vm243, %v244, %v245
        %v247 = vrot.slane %v239, 1
        %v248 = vsel %vm243, %v245, %v247
        %v251 = vadd.f32 %v223, %v246
        %v252 = vadd.f32 %v224, %v248
        %v256 = vrot.slane %v209, 2
        %v257 = vrot.slane %v210, 2
        %v258 = vsel %vm228, %v256, %v257
        %v259 = vrot.slane %v211, 2
        %v260 = vsel %vm228, %v257, %v259
        %v263 = vadd.f32 %v251, %v258
        %v264 = vadd.f32 %v252, %v260
        %265 = vst.msk [vmem:[%s134] sm:$0xff] %vm140, %v263
        %266 = vst.msk [vmem:[%s134 + $0x8] sm:$0xff] %vm140, %v264
        %s267 = sand.u32 %s52, 1
        %s268 = scalar_lea.sflag [#allocation5], %s267
        %s269 = sand.u32 %s52, 1
        %s270 = smul.addr %s269, 16
        %s271 = scalar_lea.vmem [#allocation6], %s270
        // Predicated region
        $region29: #{kv_filter_conv.1} parent=23 // pred_check
          %p272 = pneg %p62
        $region30: #{kv_filter_conv.1} parent=23 // pred_check_branch
          %274 = sbr.rel (%p272) target = $region32
        $region31: #{kv_filter_conv.1} parent=23 // pred_region
          %s276 = ssub.s32 256, 256
          %277 = vsyncadd %s268, %s276
          %s278 = smul.addr %s18, 2
          %s279 = smul.addr %s278, 128
          %s280 = scalar_lea.hbm %s1, %s279
          %s281 = sshll.u32 %s271, 4
          %s282 = int_to_ptr.vmem [resolvable:$true] %s281
          %287 = dma.vmem_to_hbm [thread:$0]  %s282, 256, %s280, %s268, 128, 128, 8
        $region32: #{kv_filter_conv.1} parent=23 // pred_fallthru
          _
      $region24: #{kv_filter_conv.1} parent=5 // pred_fallthru
        _
      %p288 = scmp.le.s32.totalorder 2, %s13
      // Predicated region
      $region33: #{kv_filter_conv.1} parent=5 // pred_check
        %p289 = pneg %p288
      $region34: #{kv_filter_conv.1} parent=5 // pred_check_branch
        %291 = sbr.rel (%p289) target = $region36
      $region35: #{kv_filter_conv.1} parent=5 // pred_region
        %s292 = ssub.s32 %s13, 2
        // Predicated region
        $region37: #{kv_filter_conv.1} parent=35 // pred_check
          %p293 = pneg %p68
        $region38: #{kv_filter_conv.1} parent=35 // pred_check_branch
          %295 = sbr.rel (%p293) target = $region40
        $region39: #{kv_filter_conv.1} parent=35 // pred_region
          %s296 = sand.u32 %s53, 1
          %s297 = scalar_lea.sflag [#allocation5], %s296
          %s298 = sand.u32 %s53, 1
          %s299 = smul.addr %s298, 16
          %s300 = scalar_lea.vmem [#allocation6], %s299
          %301 = dma.done %s297, 256
        $region40: #{kv_filter_conv.1} parent=35 // pred_fallthru
          _
      $region36: #{kv_filter_conv.1} parent=5 // pred_fallthru
        _
    $region6: #{kv_filter_conv.1} parent=1 // loop_footer
      %s17 = sadd.s32 1, %s13
    $region7: #{kv_filter_conv.1} parent=1 // loop_footer_branch
      %12 = sbr.rel target = $region3
    $region8: #{kv_filter_conv.1} parent=1 // loop_exit
      _
    %302 = vsyncpa [#allocation4], 1
    %s303 = scalar_lea.sflag [#allocation4], 1
    %304 = vsyncpa %s303, 1
    %305 = vsyncpa [#allocation5], 1
    %s306 = scalar_lea.sflag [#allocation5], 1
    %307 = vsyncpa %s306, 1

</llo_original>
